<compile_context>
chip_gen: v5e
topology: v5e:2x2
jax: 0.10.0
libtpu: 0.0.40
codegen_flags: <defaults>
</compile_context>

<pallas_src>
import jax
import jax.numpy as jnp
from jax.experimental import pallas as pl
from jax.experimental.pallas import tpu as pltpu

_SUBLANE = 8  # f32 sublane granularity (second-to-last dim)


def _round_up(x, m):
    return ((x + m - 1) // m) * m


def _mlp_kernel(x_ref, w1_ref, b1_ref, w2_ref, b2_ref, w3_ref, b3_ref, o_ref):
    """Fused 3-layer MLP on one (tile_m, d_in) batch tile.  f32 MXU accumulation."""
    cdt = w1_ref.dtype                      # compute dtype (f32 or bf16)
    x = x_ref[...].astype(cdt)              # in-kernel cast (no extra HBM pass)
    # Layer 1: Linear + ReLU
    h = jnp.dot(x, w1_ref[...], preferred_element_type=jnp.float32)
    h = jnp.maximum(h + b1_ref[...], 0.0).astype(cdt)
    # Layer 2: Linear + ReLU
    h = jnp.dot(h, w2_ref[...], preferred_element_type=jnp.float32)
    h = jnp.maximum(h + b2_ref[...], 0.0).astype(cdt)
    # Output layer: Linear (no activation — embedding output)
    o = jnp.dot(h, w3_ref[...], preferred_element_type=jnp.float32) + b3_ref[...]
    o_ref[...] = o.astype(o_ref.dtype)


def net_forward(x, params, *, tile_m=None, compute_dtype=jnp.float32,
                out_dtype=jnp.float32):
    """Forward pass of Net's MLP.  x: (N, input_size) f32 -> (N, output_size) out_dtype.

    compute_dtype=jnp.bfloat16 enables the fast MXU path on v5e/v6e/v7x (f32
    accumulation and f32 bias/ReLU epilogue are kept).
    """
    (w1, b1), (w2, b2), (w3, b3) = params
    n, d_in = x.shape
    h1, h2, d_out = w1.shape[1], w2.shape[1], w3.shape[1]
    assert w1.shape[0] == d_in and w2.shape[0] == h1 and w3.shape[0] == h2

    cdt = jnp.dtype(compute_dtype)
    # Only the tiny weights are cast in the wrapper; biases stay f32; x stays f32 in HBM.
    w1c, w2c, w3c = (w.astype(cdt) for w in (w1, w2, w3))
    b1r = jnp.reshape(b1, (1, h1)).astype(jnp.float32)
    b2r = jnp.reshape(b2, (1, h2)).astype(jnp.float32)
    b3r = jnp.reshape(b3, (1, d_out)).astype(jnp.float32)

    # ---- batch tile selection -------------------------------------------------------
    if tile_m is None:
        tile_m = 1024                                   # large tiles: fewer grid steps
    tile_m = int(tile_m)
    tile_m = min(tile_m, _round_up(max(n, 1), _SUBLANE))  # no point exceeding the batch
    if n >= 16:
        # v7x: keep >= 2 grid steps so the "parallel" batch axis uses both TensorCores.
        tile_m = min(tile_m, _round_up(-(-n // 2), _SUBLANE))
    tile_m = max(_SUBLANE, _round_up(tile_m, _SUBLANE))
    grid = (pl.cdiv(n, tile_m),)                        # ragged last tile is masked

    # ---- explicit (tight) VMEM budget: ~2x footprint, well below v7x's 64 MiB --------
    wbytes = (d_in * h1 + h1 * h2 + h2 * d_out) * cdt.itemsize
    bbytes = (h1 + h2 + d_out) * 4
    xbytes = 2 * tile_m * d_in * x.dtype.itemsize       # double-buffered input tile
    obytes = 2 * tile_m * d_out * jnp.dtype(out_dtype).itemsize
    actbytes = tile_m * (h1 + h2) * (4 + cdt.itemsize)
    est = 2 * (wbytes + bbytes) + xbytes + obytes + actbytes
    vmem_limit = int(min(48 << 20, max(4 << 20, 2 * est)))

    const = lambda shape: pl.BlockSpec(shape, lambda i: (0, 0))

    return pl.pallas_call(
        _mlp_kernel,
        out_shape=jax.ShapeDtypeStruct((n, d_out), out_dtype),
        grid=grid,
        in_specs=[
            pl.BlockSpec((tile_m, d_in), lambda i: (i, 0)),
            const((d_in, h1)),
            const((1, h1)),
            const((h1, h2)),
            const((1, h2)),
            const((h2, d_out)),
            const((1, d_out)),
        ],
        out_specs=pl.BlockSpec((tile_m, d_out), lambda i: (i, 0)),
        compiler_params=pltpu.CompilerParams(
            dimension_semantics=("parallel",),   # batch axis shards across TCs (v7x)
            vmem_limit_bytes=vmem_limit,
        ),
    )(x, w1c, b1r, w2c, b2r, w3c, b3r)


def init_params(key, input_size, hidden_sizes, output_size):
    """Deterministic PyTorch-style (uniform +-1/sqrt(fan_in)) initialization.

    Weights are stored as (in_features, out_features), i.e. already transposed relative
    to nn.Linear.weight, so the kernel computes x @ W directly.
    """
    sizes = [input_size] + list(hidden_sizes) + [output_size]
    params = []
    for fan_in, fan_out in zip(sizes[:-1], sizes[1:]):
        key, kw, kb = jax.random.split(key, 3)
        bound = 1.0 / jnp.sqrt(jnp.float32(fan_in))
        w = jax.random.uniform(kw, (fan_in, fan_out), jnp.float32, -bound, bound)
        b = jax.random.uniform(kb, (1, fan_out), jnp.float32, -bound, bound)
        params.append((w, b))
    return params


def _reference_forward(x, params, compute_dtype=jnp.float32):
    """Pure-JAX reference with the exact same per-layer cast discipline as the kernel."""
    (w1, b1), (w2, b2), (w3, b3) = params
    cdt = jnp.dtype(compute_dtype)
    h = jnp.dot(x.astype(cdt), w1.astype(cdt), preferred_element_type=jnp.float32)
    h = jnp.maximum(h + b1.reshape(1, -1), 0.0).astype(cdt)
    h = jnp.dot(h, w2.astype(cdt), preferred_element_type=jnp.float32)
    h = jnp.maximum(h + b2.reshape(1, -1), 0.0).astype(cdt)
    return jnp.dot(h, w3.astype(cdt), preferred_element_type=jnp.float32) + b3.reshape(1, -1)


if __name__ == "__main__":
    # Shapes consistent with Net(hidden_model, input_size, output_size, hidden_sizes):
    # a batch of feature vectors reduced to a low-dimensional embedding.
    INPUT_SIZE = 16
    HIDDEN_SIZES = (32, 32)
    OUTPUT_SIZE = 2

    key = jax.random.PRNGKey(0)
    key, kparams = jax.random.split(key)
    params = init_params(kparams, INPUT_SIZE, HIDDEN_SIZES, OUTPUT_SIZE)

    # --- Test 1: tiny batch, exact f32 semantics (matches the PyTorch module) ---------
    key, kx1 = jax.random.split(key)
    x1 = jax.random.normal(kx1, (8, INPUT_SIZE), dtype=jnp.float32)
    out1 = jax.block_until_ready(net_forward(x1, params, compute_dtype=jnp.float32))
    ref1 = _reference_forward(x1, params)
    assert out1.shape == (8, OUTPUT_SIZE)
    assert jnp.allclose(out1, ref1, atol=1e-5, rtol=1e-5)

    # --- Test 2: ragged multi-step grid (auto tile_m -> 2 steps) + bf16 MXU fast path --
    key, kx2 = jax.random.split(key)
    x2 = jax.random.normal(kx2, (250, INPUT_SIZE), dtype=jnp.float32)  # ragged N
    out2 = jax.block_until_ready(net_forward(x2, params, compute_dtype=jnp.bfloat16))
    ref2 = _reference_forward(x2, params, compute_dtype=jnp.bfloat16)
    assert out2.shape == (250, OUTPUT_SIZE)
    assert jnp.allclose(out2, ref2, atol=2e-2, rtol=2e-2)

    # --- Test 3: explicit small tile (multi-step pipelined grid, f32) ------------------
    out3 = jax.block_until_ready(net_forward(x2, params, tile_m=64))
    ref3 = _reference_forward(x2, params)
    assert jnp.allclose(out3, ref3, atol=1e-5, rtol=1e-5)

    print("KERNEL_OK")
</pallas_src>

<mosaic_0001>
module attributes {stable_mosaic.version = 11 : i64} {
  func.func @_mlp_kernel(%arg0: i32, %arg1: memref<8x16xf32, #tpu.memory_space<vmem>>, %arg2: memref<16x32xf32, #tpu.memory_space<vmem>>, %arg3: memref<1x32xf32, #tpu.memory_space<vmem>>, %arg4: memref<32x32xf32, #tpu.memory_space<vmem>>, %arg5: memref<1x32xf32, #tpu.memory_space<vmem>>, %arg6: memref<32x2xf32, #tpu.memory_space<vmem>>, %arg7: memref<1x2xf32, #tpu.memory_space<vmem>>, %arg8: memref<8x2xf32, #tpu.memory_space<vmem>>) attributes {dimension_semantics = [#tpu.dimension_semantics<parallel>], iteration_bounds = array<i64: 1>, scalar_prefetch = 0 : i64, scratch_operands = 0 : i64, tpu.core_type = #tpu.core_type<tc>, window_params = [{transform_indices = @transform_0, window_bounds = array<i64: 8, 16>}, {pipeline_mode = #tpu.pipeline_mode<synchronous>, transform_indices = @transform_1, window_bounds = array<i64: 16, 32>}, {pipeline_mode = #tpu.pipeline_mode<synchronous>, transform_indices = @transform_2, window_bounds = array<i64: 1, 32>}, {pipeline_mode = #tpu.pipeline_mode<synchronous>, transform_indices = @transform_3, window_bounds = array<i64: 32, 32>}, {pipeline_mode = #tpu.pipeline_mode<synchronous>, transform_indices = @transform_4, window_bounds = array<i64: 1, 32>}, {pipeline_mode = #tpu.pipeline_mode<synchronous>, transform_indices = @transform_5, window_bounds = array<i64: 32, 2>}, {pipeline_mode = #tpu.pipeline_mode<synchronous>, transform_indices = @transform_6, window_bounds = array<i64: 1, 2>}, {transform_indices = @transform_7, window_bounds = array<i64: 8, 2>}]} {
    %c0 = arith.constant 0 : index
    %c0_0 = arith.constant 0 : index
    %0 = vector.load %arg1[%c0, %c0_0] : memref<8x16xf32, #tpu.memory_space<vmem>>, vector<8x16xf32>
    %c0_1 = arith.constant 0 : index
    %c0_2 = arith.constant 0 : index
    %1 = vector.load %arg2[%c0_1, %c0_2] : memref<16x32xf32, #tpu.memory_space<vmem>>, vector<16x32xf32>
    %cst = arith.constant dense<0.000000e+00> : vector<8x32xf32>
    %2 = tpu.matmul %0, %1, %cst {dimension_numbers = #tpu.dot_dimension_numbers<[1], [0], [0], [1], [0, 0, 1, 1], [], []>} : vector<8x16xf32>, vector<16x32xf32>, vector<8x32xf32> -> vector<8x32xf32>
    %c0_3 = arith.constant 0 : index
    %c0_4 = arith.constant 0 : index
    %3 = vector.load %arg3[%c0_3, %c0_4] : memref<1x32xf32, #tpu.memory_space<vmem>>, vector<1x32xf32>
    %4 = vector.broadcast %3 : vector<1x32xf32> to vector<8x32xf32>
    %5 = arith.addf %2, %4 : vector<8x32xf32>
    %cst_5 = arith.constant 0.000000e+00 : f32
    %6 = vector.broadcast %cst_5 : f32 to vector<8x32xf32>
    %7 = arith.maximumf %5, %6 : vector<8x32xf32>
    %c0_6 = arith.constant 0 : index
    %c0_7 = arith.constant 0 : index
    %8 = vector.load %arg4[%c0_6, %c0_7] : memref<32x32xf32, #tpu.memory_space<vmem>>, vector<32x32xf32>
    %cst_8 = arith.constant dense<0.000000e+00> : vector<8x32xf32>
    %9 = tpu.matmul %7, %8, %cst_8 {dimension_numbers = #tpu.dot_dimension_numbers<[1], [0], [0], [1], [0, 0, 1, 1], [], []>} : vector<8x32xf32>, vector<32x32xf32>, vector<8x32xf32> -> vector<8x32xf32>
    %c0_9 = arith.constant 0 : index
    %c0_10 = arith.constant 0 : index
    %10 = vector.load %arg5[%c0_9, %c0_10] : memref<1x32xf32, #tpu.memory_space<vmem>>, vector<1x32xf32>
    %11 = vector.broadcast %10 : vector<1x32xf32> to vector<8x32xf32>
    %12 = arith.addf %9, %11 : vector<8x32xf32>
    %cst_11 = arith.constant 0.000000e+00 : f32
    %13 = vector.broadcast %cst_11 : f32 to vector<8x32xf32>
    %14 = arith.maximumf %12, %13 : vector<8x32xf32>
    %c0_12 = arith.constant 0 : index
    %c0_13 = arith.constant 0 : index
    %15 = vector.load %arg6[%c0_12, %c0_13] : memref<32x2xf32, #tpu.memory_space<vmem>>, vector<32x2xf32>
    %cst_14 = arith.constant dense<0.000000e+00> : vector<8x2xf32>
    %16 = tpu.matmul %14, %15, %cst_14 {dimension_numbers = #tpu.dot_dimension_numbers<[1], [0], [0], [1], [0, 0, 1, 1], [], []>} : vector<8x32xf32>, vector<32x2xf32>, vector<8x2xf32> -> vector<8x2xf32>
    %c0_15 = arith.constant 0 : index
    %c0_16 = arith.constant 0 : index
    %17 = vector.load %arg7[%c0_15, %c0_16] : memref<1x2xf32, #tpu.memory_space<vmem>>, vector<1x2xf32>
    %18 = vector.broadcast %17 : vector<1x2xf32> to vector<8x2xf32>
    %19 = arith.addf %16, %18 : vector<8x2xf32>
    %c0_17 = arith.constant 0 : index
    %c0_18 = arith.constant 0 : index
    %20 = vector.load %arg8[%c0_17, %c0_18] : memref<8x2xf32, #tpu.memory_space<vmem>>, vector<8x2xf32>
    tpu.vector_store %arg8[%c0_17, %c0_18], %19 {strides = array<i32>} : memref<8x2xf32, #tpu.memory_space<vmem>>, vector<8x2xf32>,
    return
  }
  func.func @transform_0(%arg0: i32) -> (i32, i32) {
    %c0_i32 = arith.constant 0 : i32
    %c0_i32_0 = arith.constant 0 : i32
    return %arg0, %c0_i32 : i32, i32
  }
  func.func @transform_1(%arg0: i32) -> (i32, i32) {
    %c0_i32 = arith.constant 0 : i32
    %c0_i32_0 = arith.constant 0 : i32
    %c0_i32_1 = arith.constant 0 : i32
    return %c0_i32, %c0_i32_0 : i32, i32
  }
  func.func @transform_2(%arg0: i32) -> (i32, i32) {
    %c0_i32 = arith.constant 0 : i32
    %c0_i32_0 = arith.constant 0 : i32
    %c0_i32_1 = arith.constant 0 : i32
    return %c0_i32, %c0_i32_0 : i32, i32
  }
  func.func @transform_3(%arg0: i32) -> (i32, i32) {
    %c0_i32 = arith.constant 0 : i32
    %c0_i32_0 = arith.constant 0 : i32
    %c0_i32_1 = arith.constant 0 : i32
    return %c0_i32, %c0_i32_0 : i32, i32
  }
  func.func @transform_4(%arg0: i32) -> (i32, i32) {
    %c0_i32 = arith.constant 0 : i32
    %c0_i32_0 = arith.constant 0 : i32
    %c0_i32_1 = arith.constant 0 : i32
    return %c0_i32, %c0_i32_0 : i32, i32
  }
  func.func @transform_5(%arg0: i32) -> (i32, i32) {
    %c0_i32 = arith.constant 0 : i32
    %c0_i32_0 = arith.constant 0 : i32
    %c0_i32_1 = arith.constant 0 : i32
    return %c0_i32, %c0_i32_0 : i32, i32
  }
  func.func @transform_6(%arg0: i32) -> (i32, i32) {
    %c0_i32 = arith.constant 0 : i32
    %c0_i32_0 = arith.constant 0 : i32
    %c0_i32_1 = arith.constant 0 : i32
    return %c0_i32, %c0_i32_0 : i32, i32
  }
  func.func @transform_7(%arg0: i32) -> (i32, i32) {
    %c0_i32 = arith.constant 0 : i32
    %c0_i32_0 = arith.constant 0 : i32
    return %arg0, %c0_i32 : i32, i32
  }
}

</mosaic_0001>

<llo_original>
// kernel: tpu_custom_call.1
$region0: #{tpu_custom_call.1}
  #allocation0 [shape = 'u32[]', space=smem, size = 0x4, offset = 0x4, fixed_abs, tag = 'smem constant byte address 0x4 - core index']
  #allocation1 [shape = 'u32[72,128]{1,0:T(1,128)}', space=vmem, size = 0x9000, scoped, tag = 'internal scratch']
  %s0 = inlined_call_operand.hbm [shape: f32[8,16], index: 0, kind: input, shape index: {}]
  %s1 = inlined_call_operand.hbm [shape: f32[16,32], index: 1, kind: input, shape index: {}]
  %s2 = inlined_call_operand.vmem [shape: f32[1,32], index: 2, kind: input, shape index: {}]
  %s3 = inlined_call_operand.vmem [shape: f32[32,32], index: 3, kind: input, shape index: {}]
  %s4 = inlined_call_operand.vmem [shape: f32[1,32], index: 4, kind: input, shape index: {}]
  %s5 = inlined_call_operand.vmem [shape: f32[32,2], index: 5, kind: input, shape index: {}]
  %s6 = inlined_call_operand.vmem [shape: f32[1,2], index: 6, kind: input, shape index: {}]
  %s7 = inlined_call_operand.vmem [shape: f32[8,2], index: 7, kind: output, shape index: {}]
  %s8 = sld [smem:[#allocation0]]
  $region46: #{tpu_custom_call.1} parent=0
    _
  %s10 = ssub.s32 1, %s8
  %s11 = scalar_select 0, %s10, %s8
  $region1: #{tpu_custom_call.1} parent=0
    #allocation2 [shape = 'u8[4096]{0}', space=vmem, size = 0x1000, scoped, tag = 'input window, operand 0, single buffered']
    #allocation3 [shape = 's32[1]{0}', space=sflag, size = 0x4, scoped, tag = 'scoped memory for tpu_custom_call.1']
    #allocation4 [shape = 'u8[8192]{0}', space=vmem, size = 0x2000, scoped, tag = 'input window, operand 1, single buffered']
    #allocation5 [shape = 's32[1]{0}', space=sflag, size = 0x4, scoped, tag = 'scoped memory for tpu_custom_call.1']
    %12 = vsyncpa [#allocation3], 0
    %13 = vsyncpa [#allocation5], 0
    // Predicated region
    $region2: #{tpu_custom_call.1} parent=1 // pred_check
      _
    $region3: #{tpu_custom_call.1} parent=1 // pred_check_branch
      %15 = sbr.rel (0) target = $region5
    $region4: #{tpu_custom_call.1} parent=1 // pred_region
      %17 = vsyncadd [#allocation3], 0
      %s19 = sshll.u32 %s0, 4
      %s20 = int_to_ptr.hbm [resolvable:$true] %s19
      %s21 = sshll.u32 [#allocation2], 4
      %s22 = int_to_ptr.vmem [resolvable:$true] %s21
      %24 = dma.hbm_to_vmem [thread:$0]  %s20, 128, %s22, [#allocation3]
    $region5: #{tpu_custom_call.1} parent=1 // pred_fallthru
      _
    // Predicated region
    $region6: #{tpu_custom_call.1} parent=1 // pred_check
      _
    $region7: #{tpu_custom_call.1} parent=1 // pred_check_branch
      %26 = sbr.rel (0) target = $region9
    $region8: #{tpu_custom_call.1} parent=1 // pred_region
      %28 = vsyncadd [#allocation5], 0
      %s29 = sshll.u32 %s1, 4
      %s30 = int_to_ptr.hbm [resolvable:$true] %s29
      %s31 = sshll.u32 [#allocation4], 4
      %s32 = int_to_ptr.vmem [resolvable:$true] %s31
      %37 = dma.hbm_to_vmem [thread:$0]  %s30, 256, %s32, [#allocation5], 128, 128, 8
    $region9: #{tpu_custom_call.1} parent=1 // pred_fallthru
      _
    // Predicated region
    $region10: #{tpu_custom_call.1} parent=1 // pred_check
      _
    $region11: #{tpu_custom_call.1} parent=1 // pred_check_branch
      %39 = sbr.rel (0) target = $region13
    $region12: #{tpu_custom_call.1} parent=1 // pred_region
      _
    $region13: #{tpu_custom_call.1} parent=1 // pred_fallthru
      _
    // Predicated region
    $region14: #{tpu_custom_call.1} parent=1 // pred_check
      _
    $region15: #{tpu_custom_call.1} parent=1 // pred_check_branch
      %41 = sbr.rel (0) target = $region17
    $region16: #{tpu_custom_call.1} parent=1 // pred_region
      _
    $region17: #{tpu_custom_call.1} parent=1 // pred_fallthru
      _
    // Predicated region
    $region18: #{tpu_custom_call.1} parent=1 // pred_check
      _
    $region19: #{tpu_custom_call.1} parent=1 // pred_check_branch
      %43 = sbr.rel (0) target = $region21
    $region20: #{tpu_custom_call.1} parent=1 // pred_region
      _
    $region21: #{tpu_custom_call.1} parent=1 // pred_fallthru
      _
    // Predicated region
    $region22: #{tpu_custom_call.1} parent=1 // pred_check
      _
    $region23: #{tpu_custom_call.1} parent=1 // pred_check_branch
      %45 = sbr.rel (0) target = $region25
    $region24: #{tpu_custom_call.1} parent=1 // pred_region
      _
    $region25: #{tpu_custom_call.1} parent=1 // pred_fallthru
      _
    // Predicated region
    $region26: #{tpu_custom_call.1} parent=1 // pred_check
      _
    $region27: #{tpu_custom_call.1} parent=1 // pred_check_branch
      %47 = sbr.rel (0) target = $region29
    $region28: #{tpu_custom_call.1} parent=1 // pred_region
      _
    $region29: #{tpu_custom_call.1} parent=1 // pred_fallthru
      _
    // Predicated region
    $region30: #{tpu_custom_call.1} parent=1 // pred_check
      _
    $region31: #{tpu_custom_call.1} parent=1 // pred_check_branch
      %49 = sbr.rel (0) target = $region33
    $region32: #{tpu_custom_call.1} parent=1 // pred_region
      %51 = dma.done [#allocation3], 128
    $region33: #{tpu_custom_call.1} parent=1 // pred_fallthru
      _
    // Predicated region
    $region34: #{tpu_custom_call.1} parent=1 // pred_check
      _
    $region35: #{tpu_custom_call.1} parent=1 // pred_check_branch
      %53 = sbr.rel (0) target = $region37
    $region36: #{tpu_custom_call.1} parent=1 // pred_region
      %55 = dma.done [#allocation5], 256
    $region37: #{tpu_custom_call.1} parent=1 // pred_fallthru
      _
    %v56 = vld [vmem:[#allocation2] sm:$0xff]
    %v57 = vld [vmem:[#allocation4] sm:$0xff]
    %v58 = vld [vmem:[#allocation4 + $0x8] sm:$0xff]
    %v59 = vld [vmem:[%s2] sm:$0x1]
    %v61 = vperm.slane %v59, 0
    %vm63 = vcmask 130048
    %v65 = vsel %vm63, %v56, 0
    %67 = vmatpush.msra.mxu0 0.0
    %68 = vmatpush.msra.mxu0 0.0
    %69 = vmatpush.msra.mxu0 0.0
    %70 = vmatpush.msra.mxu0 0.0
    %71 = vmatpush.msra.mxu0 0.0
    %72 = vmatpush.msra.mxu0 0.0
    %73 = vmatpush.msra.mxu0 0.0
    %74 = vmatpush.msra.mxu0 0.0
    %75 = vmatpush.msra.mxu0 0.0
    %76 = vmatpush.msra.mxu0 0.0
    %77 = vmatpush.msra.mxu0 0.0
    %78 = vmatpush.msra.mxu0 0.0
    %79 = vmatpush.msra.mxu0 0.0
    %80 = vmatpush.msra.mxu0 0.0
    %81 = vmatpush.msra.mxu0 %v58
    %82 = vmatpush.msra.mxu0 %v57
    %83 = vmatmul.f32.gmra.mxu0 %v65
    %v84 = vpop.f32.mrf.mxu0
    %v85 = vadd.f32 %v61, %v84
    %86 = vdwg.mxu0
    %v87 = vmax.f32 %v85, 0.0
    %v88 = vld [vmem:[%s3] sm:$0xff]
    %v89 = vld [vmem:[%s3 + $0x8] sm:$0xff]
    %v90 = vld [vmem:[%s3 + $0x10] sm:$0xff]
    %v91 = vld [vmem:[%s3 + $0x18] sm:$0xff]
    %v92 = vld [vmem:[%s4] sm:$0x1]
    %v94 = vperm.slane %v92, 0
    %vm96 = vcmask 261120
    %v98 = vsel %vm96, %v87, 0
    %100 = vmatpush.msra.mxu0 0.0
    %101 = vmatpush.msra.mxu0 0.0
    %102 = vmatpush.msra.mxu0 0.0
    %103 = vmatpush.msra.mxu0 0.0
    %104 = vmatpush.msra.mxu0 0.0
    %105 = vmatpush.msra.mxu0 0.0
    %106 = vmatpush.msra.mxu0 0.0
    %107 = vmatpush.msra.mxu0 0.0
    %108 = vmatpush.msra.mxu0 0.0
    %109 = vmatpush.msra.mxu0 0.0
    %110 = vmatpush.msra.mxu0 0.0
    %111 = vmatpush.msra.mxu0 0.0
    %112 = vmatpush.msra.mxu0 %v91
    %113 = vmatpush.msra.mxu0 %v90
    %114 = vmatpush.msra.mxu0 %v89
    %115 = vmatpush.msra.mxu0 %v88
    %116 = vmatmul.f32.gmra.mxu0 %v98
    %v117 = vpop.f32.mrf.mxu0
    %v118 = vadd.f32 %v94, %v117
    %119 = vdwg.mxu0
    %v120 = vmax.f32 %v118, 0.0
    %v121 = vld [vmem:[%s5] sm:$0xff]
    %v122 = vld [vmem:[%s5 + $0x8] sm:$0xff]
    %v123 = vld [vmem:[%s5 + $0x10] sm:$0xff]
    %v124 = vld [vmem:[%s5 + $0x18] sm:$0xff]
    %v125 = vld [vmem:[%s6] sm:$0x1]
    %v127 = vperm.slane %v125, 0
    %v130 = vsel %vm96, %v120, 0
    %132 = vmatpush.msra.mxu0 0.0
    %133 = vmatpush.msra.mxu0 0.0
    %134 = vmatpush.msra.mxu0 0.0
    %135 = vmatpush.msra.mxu0 0.0
    %136 = vmatpush.msra.mxu0 0.0
    %137 = vmatpush.msra.mxu0 0.0
    %138 = vmatpush.msra.mxu0 0.0
    %139 = vmatpush.msra.mxu0 0.0
    %140 = vmatpush.msra.mxu0 0.0
    %141 = vmatpush.msra.mxu0 0.0
    %142 = vmatpush.msra.mxu0 0.0
    %143 = vmatpush.msra.mxu0 0.0
    %144 = vmatpush.msra.mxu0 %v124
    %145 = vmatpush.msra.mxu0 %v123
    %146 = vmatpush.msra.mxu0 %v122
    %147 = vmatpush.msra.mxu0 %v121
    %148 = vmatmul.f32.gmra.mxu0 %v130
    %v149 = vpop.f32.mrf.mxu0
    %v150 = vadd.f32 %v127, %v149
    %151 = vdwg.mxu0
    %vm152 = vcmask 15360
    %153 = vst.msk [vmem:[%s7] sm:$0xff] %vm152, %v150
    // Predicated region
    $region38: #{tpu_custom_call.1} parent=1 // pred_check
      _
    $region39: #{tpu_custom_call.1} parent=1 // pred_check_branch
      %155 = sbr.rel (0) target = $region41
    $region40: #{tpu_custom_call.1} parent=1 // pred_region
      _
    $region41: #{tpu_custom_call.1} parent=1 // pred_fallthru
      _
    // Predicated region
    $region42: #{tpu_custom_call.1} parent=1 // pred_check
      _
    $region43: #{tpu_custom_call.1} parent=1 // pred_check_branch
      %157 = sbr.rel (0) target = $region45
    $region44: #{tpu_custom_call.1} parent=1 // pred_region
      _
    $region45: #{tpu_custom_call.1} parent=1 // pred_fallthru
      _
    %158 = vsyncpa [#allocation3], 1
    %159 = vsyncpa [#allocation5], 1

</llo_original>
